<compile_context>
chip_gen: v6e
topology: v6e:2x2x1
jax: 0.10.0
libtpu: 0.0.40
codegen_flags: <defaults>
</compile_context>

<pallas_src>
import math

import jax
import jax.numpy as jnp
from jax import lax
from jax.experimental import pallas as pl
from jax.experimental.pallas import tpu as pltpu

TWO_PI = 2.0 * math.pi
HALF_PI = 0.5 * math.pi


def _pos_emb_kernel(x_ref, w_ref, p_ref, out_ref):
    # x_ref:   (tn, 1)     positions (sublane axis)
    # w_ref:   (1, feat)   [0, w, w] * 2*pi            (resident across steps)
    # p_ref:   (1, feat)   [0, 0..0, pi/2..pi/2]       (resident across steps)
    # out_ref: (tn, feat)  feat = 2*half + 1, final (N, dim+1) layout
    x = x_ref[...]                                    # (tn, 1) f32
    theta = x * w_ref[...] + p_ref[...]               # (tn, feat) f32
    col = lax.broadcasted_iota(jnp.int32, theta.shape, 1)
    # column 0 = raw-x passthrough; columns 1..half = sin(freq);
    # columns half+1.. = sin(freq + pi/2) = cos(freq).
    out = jnp.where(col == 0, x, jnp.sin(theta))
    out_ref[...] = out.astype(out_ref.dtype)


def _choose_rows_tile(n_rows, feat, *, vmem_budget_bytes=24 << 20, max_rows=32768):
    """VMEM-aware row-tile: double-buffered f32 x-tile (lane-padded to 128)
    plus out-tile (lane-padded to ceil(feat/128)*128) must fit the budget."""
    out_lanes = 128 * pl.cdiv(feat, 128)
    per_row_bytes = 2 * 4 * (128 + out_lanes)          # 2 buffers, f32
    tn = min(vmem_budget_bytes // per_row_bytes, max_rows)
    if n_rows >= 2048:
        tn = min(tn, pl.cdiv(n_rows, 2))               # >= 2 parallel steps (v7x megacore)
    tn = min(tn, n_rows)
    tn = max(8, 8 * (tn // 8))                          # sublane-aligned
    return int(tn)


def learned_sinusoidal_pos_emb(x, weights, *, out_dtype=None):
    """x: (B, L); weights: (dim//2,)  ->  (B, L, dim+1)."""
    B, L = x.shape
    half = weights.shape[0]
    feat = 2 * half + 1
    N = B * L
    out_dtype = x.dtype if out_dtype is None else out_dtype

    x_col = x.reshape(N, 1).astype(jnp.float32)        # free reshape, no pad
    w32 = weights.astype(jnp.float32)
    # Tiny (1, feat) rows built once in XLA: 2*pi folded into the duplicated
    # frequency row; a pi/2 phase turns the second copy's sin into cos.
    w_row = (jnp.concatenate([jnp.zeros((1,), jnp.float32), w32, w32]) * TWO_PI
             ).reshape(1, feat)
    p_row = jnp.concatenate([jnp.zeros((1 + half,), jnp.float32),
                             jnp.full((half,), HALF_PI, jnp.float32)]
                            ).reshape(1, feat)

    tn = _choose_rows_tile(N, feat)
    grid = (pl.cdiv(N, tn),)

    # Only what this pallas_call itself touches (epilogue is a free reshape).
    cost = pl.CostEstimate(
        flops=2 * N * feat,                 # theta = x * w + p
        transcendentals=N * (feat - 1),     # one sin per sin/cos column
        bytes_accessed=4 * (N + 2 * feat + N * feat),
    )

    out = pl.pallas_call(
        _pos_emb_kernel,
        out_shape=jax.ShapeDtypeStruct((N, feat), out_dtype),
        grid=grid,
        in_specs=[
            pl.BlockSpec((tn, 1), lambda i: (i, 0)),      # x rows (ragged last block OK)
            pl.BlockSpec((1, feat), lambda i: (0, 0)),    # frequency row, resident
            pl.BlockSpec((1, feat), lambda i: (0, 0)),    # phase row, resident
        ],
        out_specs=pl.BlockSpec((tn, feat), lambda i: (i, 0)),
        compiler_params=pltpu.CompilerParams(
            dimension_semantics=("parallel",),
            vmem_limit_bytes=32 * 1024 * 1024,
        ),
        cost_estimate=cost,
    )(x_col, w_row, p_row)

    return out.reshape(B, L, feat)          # free: (N, dim+1) -> (B, L, dim+1)


if __name__ == "__main__":
    key = jax.random.PRNGKey(0)
    k_x, k_w = jax.random.split(key)

    B, L, dim = 2, 8, 32                 # dim % 2 == 0, as asserted in __init__
    half = dim // 2

    x = jax.random.normal(k_x, (B, L), dtype=jnp.float32)
    weights = jax.random.normal(k_w, (half,), dtype=jnp.float32)  # ~ torch.randn(dim//2)

    out = jax.block_until_ready(learned_sinusoidal_pos_emb(x, weights))

    # Reference check in plain JAX (same semantics as the torch forward).
    freq_ref = x[:, :, None] * weights[None, None, :] * TWO_PI
    ref = jnp.concatenate([x[:, :, None], jnp.sin(freq_ref), jnp.cos(freq_ref)], axis=-1)
    assert out.shape == (B, L, dim + 1)
    assert jnp.allclose(out, ref, atol=1e-5, rtol=1e-5)

    print("KERNEL_OK")
</pallas_src>

<mosaic_0001>
module attributes {stable_mosaic.version = 11 : i64} {
  func.func @_pos_emb_kernel(%arg0: i32, %arg1: memref<16x1xf32, #tpu.memory_space<vmem>>, %arg2: memref<1x33xf32, #tpu.memory_space<vmem>>, %arg3: memref<1x33xf32, #tpu.memory_space<vmem>>, %arg4: memref<16x33xf32, #tpu.memory_space<vmem>>) attributes {dimension_semantics = [#tpu.dimension_semantics<parallel>], iteration_bounds = array<i64: 1>, scalar_prefetch = 0 : i64, scratch_operands = 0 : i64, tpu.core_type = #tpu.core_type<tc>, window_params = [{transform_indices = @transform_0, window_bounds = array<i64: 16, 1>}, {pipeline_mode = #tpu.pipeline_mode<synchronous>, transform_indices = @transform_1, window_bounds = array<i64: 1, 33>}, {pipeline_mode = #tpu.pipeline_mode<synchronous>, transform_indices = @transform_2, window_bounds = array<i64: 1, 33>}, {transform_indices = @transform_3, window_bounds = array<i64: 16, 33>}]} {
    %c0 = arith.constant 0 : index
    %c0_0 = arith.constant 0 : index
    %0 = vector.load %arg1[%c0, %c0_0] : memref<16x1xf32, #tpu.memory_space<vmem>>, vector<16x1xf32>
    %c0_1 = arith.constant 0 : index
    %c0_2 = arith.constant 0 : index
    %1 = vector.load %arg2[%c0_1, %c0_2] : memref<1x33xf32, #tpu.memory_space<vmem>>, vector<1x33xf32>
    %2 = vector.broadcast %0 : vector<16x1xf32> to vector<16x33xf32>
    %3 = vector.broadcast %1 : vector<1x33xf32> to vector<16x33xf32>
    %4 = arith.mulf %2, %3 : vector<16x33xf32>
    %c0_3 = arith.constant 0 : index
    %c0_4 = arith.constant 0 : index
    %5 = vector.load %arg3[%c0_3, %c0_4] : memref<1x33xf32, #tpu.memory_space<vmem>>, vector<1x33xf32>
    %6 = vector.broadcast %5 : vector<1x33xf32> to vector<16x33xf32>
    %7 = arith.addf %4, %6 : vector<16x33xf32>
    %8 = tpu.iota {dimensions = array<i32: 1>} : vector<16x33xi32>
    %c0_i32 = arith.constant 0 : i32
    %9 = vector.broadcast %c0_i32 : i32 to vector<16x33xi32>
    %10 = arith.cmpi eq, %8, %9 : vector<16x33xi32>
    %11 = math.sin %7 : vector<16x33xf32>
    %12 = vector.shape_cast %0 : vector<16x1xf32> to vector<16x1xf32>
    %13 = vector.broadcast %12 : vector<16x1xf32> to vector<16x33xf32>
    %14 = arith.select %10, %13, %11 : vector<16x33xi1>, vector<16x33xf32>
    %c0_5 = arith.constant 0 : index
    %c0_6 = arith.constant 0 : index
    %15 = vector.load %arg4[%c0_5, %c0_6] : memref<16x33xf32, #tpu.memory_space<vmem>>, vector<16x33xf32>
    tpu.vector_store %arg4[%c0_5, %c0_6], %14 {strides = array<i32>} : memref<16x33xf32, #tpu.memory_space<vmem>>, vector<16x33xf32>,
    return
  }
  func.func @transform_0(%arg0: i32) -> (i32, i32) {
    %c0_i32 = arith.constant 0 : i32
    %c0_i32_0 = arith.constant 0 : i32
    return %arg0, %c0_i32 : i32, i32
  }
  func.func @transform_1(%arg0: i32) -> (i32, i32) {
    %c0_i32 = arith.constant 0 : i32
    %c0_i32_0 = arith.constant 0 : i32
    %c0_i32_1 = arith.constant 0 : i32
    return %c0_i32, %c0_i32_0 : i32, i32
  }
  func.func @transform_2(%arg0: i32) -> (i32, i32) {
    %c0_i32 = arith.constant 0 : i32
    %c0_i32_0 = arith.constant 0 : i32
    %c0_i32_1 = arith.constant 0 : i32
    return %c0_i32, %c0_i32_0 : i32, i32
  }
  func.func @transform_3(%arg0: i32) -> (i32, i32) {
    %c0_i32 = arith.constant 0 : i32
    %c0_i32_0 = arith.constant 0 : i32
    return %arg0, %c0_i32 : i32, i32
  }
}

</mosaic_0001>

<llo_original>
// kernel: tpu_custom_call.1
$region0: #{tpu_custom_call.1}
  #allocation0 [shape = 'u32[]', space=smem, size = 0x4, offset = 0x4, fixed_abs, tag = 'smem constant byte address 0x4 - core index']
  #allocation1 [shape = 'u32[144,128]{1,0:T(1,128)}', space=vmem, size = 0x12000, scoped, tag = 'internal scratch']
  %s0 = inlined_call_operand.vmem [shape: f32[16,1], index: 0, kind: input, shape index: {}]
  %s1 = inlined_call_operand.vmem [shape: f32[1,33], index: 1, kind: input, shape index: {}]
  %s2 = inlined_call_operand.vmem [shape: f32[1,33], index: 2, kind: input, shape index: {}]
  %s3 = inlined_call_operand.hbm [shape: f32[16,33], index: 3, kind: output, shape index: {}]
  %s4 = sld [smem:[#allocation0]]
  $region22: #{tpu_custom_call.1} parent=0
    _
  %s6 = ssub.s32 1, %s4
  %s7 = scalar_select 0, %s6, %s4
  $region1: #{tpu_custom_call.1} parent=0
    #allocation2 [shape = 'u8[8192]{0}', space=vmem, size = 0x2000, scoped, tag = 'output window, operand 0, single buffered']
    #allocation3 [shape = 's32[1]{0}', space=sflag, size = 0x4, scoped, tag = 'scoped memory for tpu_custom_call.1']
    %8 = vsyncpa [#allocation3], 0
    // Predicated region
    $region2: #{tpu_custom_call.1} parent=1 // pred_check
      _
    $region3: #{tpu_custom_call.1} parent=1 // pred_check_branch
      %10 = sbr.rel (0) target = $region5
    $region4: #{tpu_custom_call.1} parent=1 // pred_region
      _
    $region5: #{tpu_custom_call.1} parent=1 // pred_fallthru
      _
    // Predicated region
    $region6: #{tpu_custom_call.1} parent=1 // pred_check
      _
    $region7: #{tpu_custom_call.1} parent=1 // pred_check_branch
      %12 = sbr.rel (0) target = $region9
    $region8: #{tpu_custom_call.1} parent=1 // pred_region
      _
    $region9: #{tpu_custom_call.1} parent=1 // pred_fallthru
      _
    // Predicated region
    $region10: #{tpu_custom_call.1} parent=1 // pred_check
      _
    $region11: #{tpu_custom_call.1} parent=1 // pred_check_branch
      %14 = sbr.rel (0) target = $region13
    $region12: #{tpu_custom_call.1} parent=1 // pred_region
      _
    $region13: #{tpu_custom_call.1} parent=1 // pred_fallthru
      _
    %v15 = vld [vmem:[%s0] sm:$0xff]
    %v16 = vld [vmem:[%s0 + $0x8] sm:$0xff]
    %v17 = vld [vmem:[%s1] sm:$0x1]
    %19 = vset.pattern.permute.xlu0 0
    %20 = vperm.xlu0 %19, %v15
    %v21 = vpop.permute.xlu0 %20
    %24 = vset.pattern.permute.xlu0 0
    %25 = vperm.xlu0 %24, %v16
    %v26 = vpop.permute.xlu0 %25
    %v29 = vlaneseq
    %v30 = vshrl.u32 %v29, 7
    %v31 = vsub.s32 0, %v30
    %v32 = vrot.slane %v17, %v31
    %v34 = vmul.f32 %v21, %v32
    %v35 = vmul.f32 %v26, %v32
    %v36 = vld [vmem:[%s2] sm:$0x1]
    %v38 = vlaneseq
    %v39 = vshrl.u32 %v38, 7
    %v40 = vsub.s32 0, %v39
    %v41 = vrot.slane %v36, %v40
    %v43 = vadd.f32 %v34, %v41
    %v44 = vadd.f32 %v35, %v41
    %v45 = vlaneseq
    %v46 = vand.u32 %v45, 127
    %vm47 = vcmp.eq.s32.totalorder %v46, 0
    %v48 = vand.u32 2147483647, %v43
    %vm49 = vcmp.le.f32.partialorder %v48, 0.7853982
    %vm50 = vcmp.lt.s32.totalorder %v43, 0
    %v51 = vand.u32 %v43, 2139095040
    %v52 = vshrl.u32 %v51, 23
    %v53 = vsub.s32 %v52, 127
    %v54 = vand.u32 2147483647, %v43
    %v55 = vand.u32 %v54, 8388607
    %v56 = vor.u32 %v55, 8388608
    %v57 = vsub.s32 0, %v56
    %v58 = vadd.s32 %v53, 1
    %vm59 = vcmp.gt.s32.totalorder %v58, 0
    %v60 = vsel %vm59, %v58, 0
    %v61 = vshrl.u32 %v60, 5
    %v62 = vand.u32 %v60, 31
    %v63 = vsub.s32 32, %v62
    %v64 = vshrl.u32 683565275, %v63
    %v65 = vshll.u32 683565275, %v62
    %v66 = vshrl.u32 2475754826, %v63
    %v67 = vor.u32 %v65, %v66
    %v68 = vshll.u32 2475754826, %v62
    %v69 = vshrl.u32 2131351028, %v63
    %v70 = vor.u32 %v68, %v69
    %v71 = vshll.u32 2131351028, %v62
    %v72 = vshrl.u32 2102212464, %v63
    %v73 = vor.u32 %v71, %v72
    %v74 = vshll.u32 2102212464, %v62
    %v75 = vshrl.u32 920167782, %v63
    %v76 = vor.u32 %v74, %v75
    %v77 = vshll.u32 920167782, %v62
    %v78 = vshrl.u32 1326507024, %v63
    %v79 = vor.u32 %v77, %v78
    %vm80 = vcmp.lt.s32.totalorder %v61, 1
    %vm81 = vcmp.lt.s32.totalorder %v61, 2
    %vm82 = vcmp.lt.s32.totalorder %v61, 3
    %vm83 = vcmp.lt.s32.totalorder %v61, 4
    %v84 = vsel %vm80, %v64, %v67
    %v85 = vsel %vm83, %v73, 2102212464
    %v86 = vsel %vm82, %v70, %v85
    %v87 = vsel %vm81, %v84, %v86
    %v88 = vsel %vm80, %v67, %v70
    %v89 = vsel %vm83, %v76, 920167782
    %v90 = vsel %vm82, %v73, %v89
    %v91 = vsel %vm81, %v88, %v90
    %v92 = vsel %vm80, %v70, %v73
    %v93 = vsel %vm83, %v79, 1326507024
    %v94 = vsel %vm82, %v76, %v93
    %v95 = vsel %vm81, %v92, %v94
    %v96 = vshll.u32 %v56, 8
    %v97 = vmul.u32.u64.compose %v96, %v95
    %v98 = vextract.low.u32 %v97
    %v99 = vextract.high.u32 %v97
    %v100 = vmul.u32.u64.compose %v96, %v91
    %v101 = vextract.low.u32 %v100
    %v102 = vextract.high.u32 %v100
    %v103 = vmul.u32 %v96, %v87
    %v104 = vadd.s32 %v99, %v101
    %vm105 = vc.u32 %v99, %v101
    %v106 = vadd.s32 %v102, 1
    %v107 = vsel %vm105, %v106, %v102
    %v108 = vadd.s32 %v103, %v107
    %v109 = vadd.s32 %v108, 536870912
    %v110 = vshrl.u32 %v109, 30
    %v111 = vshll.u32 %v110, 30
    %v112 = vsub.s32 %v108, %v111
    %vm113 = vcmp.lt.s32.totalorder %v112, 0
    %v114 = vsub.s32 0, %v112
    %v115 = vsel %vm113, %v114, %v112
    %v116 = vclz %v115
    %v117 = vsub.s32 %v116, 2
    %vm118 = vcmp.gt.s32.totalorder 0, %v117
    %v119 = vsel %vm118, 0, %v117
    %v120 = vsub.s32 32, %v119
    %v121 = vshll.u32 %v112, %v119
    %v122 = vshrl.u32 %v104, %v120
    %v123 = vor.u32 %v121, %v122
    %v124 = vsub.s32 4294967266, %v119
    %v125 = vadd.s32 %v124, 127
    %v126 = vshll.u32 %v125, 23
    %v127 = vor.u32 4788187, %v126
    %v128 = vand.u32 2147483647, %v127
    %v130 = vcvt.s32.f32 %v123
    %v131 = vmul.f32 %v130, %v128
    %v132 = vxor.u32 %v131, 2147483648
    %v133 = vsel %vm50, %v132, %v131
    %v134 = vsub.s32 4, %v110
    %v135 = vsel %vm50, %v134, %v110
    %v136 = vsel %vm49, %v43, %v133
    %v137 = vsel %vm49, 0, %v135
    %v138 = vcosq.f32.pop %v136
    %v139 = vsinq.f32.pop %v136
    %vm140 = vweird.f32 %v43
    %v141 = vadd.s32 %v137, 3
    %v142 = vand.u32 %v141, 3
    %vm143 = vcmp.lt.s32.totalorder %v142, 2
    %vm144 = vcmp.eq.s32.totalorder %v142, 0
    %v145 = vxor.u32 %v139, 2147483648
    %v146 = vsel %vm144, %v138, %v145
    %vm147 = vcmp.eq.s32.totalorder %v142, 2
    %v148 = vxor.u32 %v138, 2147483648
    %v149 = vsel %vm147, %v148, %v139
    %v150 = vsel %vm143, %v146, %v149
    %v151 = vsel %vm140, nan, %v150
    %v152 = vand.u32 2147483647, %v44
    %vm153 = vcmp.le.f32.partialorder %v152, 0.7853982
    %vm154 = vcmp.lt.s32.totalorder %v44, 0
    %v155 = vand.u32 %v44, 2139095040
    %v156 = vshrl.u32 %v155, 23
    %v157 = vsub.s32 %v156, 127
    %v158 = vand.u32 2147483647, %v44
    %v159 = vand.u32 %v158, 8388607
    %v160 = vor.u32 %v159, 8388608
    %v161 = vsub.s32 0, %v160
    %v162 = vadd.s32 %v157, 1
    %vm163 = vcmp.gt.s32.totalorder %v162, 0
    %v164 = vsel %vm163, %v162, 0
    %v165 = vshrl.u32 %v164, 5
    %v166 = vand.u32 %v164, 31
    %v167 = vsub.s32 32, %v166
    %v168 = vshrl.u32 683565275, %v167
    %v169 = vshll.u32 683565275, %v166
    %v170 = vshrl.u32 2475754826, %v167
    %v171 = vor.u32 %v169, %v170
    %v172 = vshll.u32 2475754826, %v166
    %v173 = vshrl.u32 2131351028, %v167
    %v174 = vor.u32 %v172, %v173
    %v175 = vshll.u32 2131351028, %v166
    %v176 = vshrl.u32 2102212464, %v167
    %v177 = vor.u32 %v175, %v176
    %v178 = vshll.u32 2102212464, %v166
    %v179 = vshrl.u32 920167782, %v167
    %v180 = vor.u32 %v178, %v179
    %v181 = vshll.u32 920167782, %v166
    %v182 = vshrl.u32 1326507024, %v167
    %v183 = vor.u32 %v181, %v182
    %vm184 = vcmp.lt.s32.totalorder %v165, 1
    %vm185 = vcmp.lt.s32.totalorder %v165, 2
    %vm186 = vcmp.lt.s32.totalorder %v165, 3
    %vm187 = vcmp.lt.s32.totalorder %v165, 4
    %v188 = vsel %vm184, %v168, %v171
    %v189 = vsel %vm187, %v177, 2102212464
    %v190 = vsel %vm186, %v174, %v189
    %v191 = vsel %vm185, %v188, %v190
    %v192 = vsel %vm184, %v171, %v174
    %v193 = vsel %vm187, %v180, 920167782
    %v194 = vsel %vm186, %v177, %v193
    %v195 = vsel %vm185, %v192, %v194
    %v196 = vsel %vm184, %v174, %v177
    %v197 = vsel %vm187, %v183, 1326507024
    %v198 = vsel %vm186, %v180, %v197
    %v199 = vsel %vm185, %v196, %v198
    %v200 = vshll.u32 %v160, 8
    %v201 = vmul.u32.u64.compose %v200, %v199
    %v202 = vextract.low.u32 %v201
    %v203 = vextract.high.u32 %v201
    %v204 = vmul.u32.u64.compose %v200, %v195
    %v205 = vextract.low.u32 %v204
    %v206 = vextract.high.u32 %v204
    %v207 = vmul.u32 %v200, %v191
    %v208 = vadd.s32 %v203, %v205
    %vm209 = vc.u32 %v203, %v205
    %v210 = vadd.s32 %v206, 1
    %v211 = vsel %vm209, %v210, %v206
    %v212 = vadd.s32 %v207, %v211
    %v213 = vadd.s32 %v212, 536870912
    %v214 = vshrl.u32 %v213, 30
    %v215 = vshll.u32 %v214, 30
    %v216 = vsub.s32 %v212, %v215
    %vm217 = vcmp.lt.s32.totalorder %v216, 0
    %v218 = vsub.s32 0, %v216
    %v219 = vsel %vm217, %v218, %v216
    %v220 = vclz %v219
    %v221 = vsub.s32 %v220, 2
    %vm222 = vcmp.gt.s32.totalorder 0, %v221
    %v223 = vsel %vm222, 0, %v221
    %v224 = vsub.s32 32, %v223
    %v225 = vshll.u32 %v216, %v223
    %v226 = vshrl.u32 %v208, %v224
    %v227 = vor.u32 %v225, %v226
    %v228 = vsub.s32 4294967266, %v223
    %v229 = vadd.s32 %v228, 127
    %v230 = vshll.u32 %v229, 23
    %v231 = vor.u32 4788187, %v230
    %v232 = vand.u32 2147483647, %v231
    %v234 = vcvt.s32.f32 %v227
    %v235 = vmul.f32 %v234, %v232
    %v236 = vxor.u32 %v235, 2147483648
    %v237 = vsel %vm154, %v236, %v235
    %v238 = vsub.s32 4, %v214
    %v239 = vsel %vm154, %v238, %v214
    %v240 = vsel %vm153, %v44, %v237
    %v241 = vsel %vm153, 0, %v239
    %v242 = vcosq.f32.pop %v240
    %v243 = vsinq.f32.pop %v240
    %vm244 = vweird.f32 %v44
    %v245 = vadd.s32 %v241, 3
    %v246 = vand.u32 %v245, 3
    %vm247 = vcmp.lt.s32.totalorder %v246, 2
    %vm248 = vcmp.eq.s32.totalorder %v246, 0
    %v249 = vxor.u32 %v243, 2147483648
    %v250 = vsel %vm248, %v242, %v249
    %vm251 = vcmp.eq.s32.totalorder %v246, 2
    %v252 = vxor.u32 %v242, 2147483648
    %v253 = vsel %vm251, %v252, %v243
    %v254 = vsel %vm247, %v250, %v253
    %v255 = vsel %vm244, nan, %v254
    %v256 = vsel %vm47, %v21, %v151
    %v257 = vsel %vm47, %v26, %v255
    %vm258 = vcmask 269312
    %259 = vst.msk [vmem:[#allocation2] sm:$0xff] %vm258, %v256
    %260 = vst.msk [vmem:[#allocation2 + $0x8] sm:$0xff] %vm258, %v257
    // Predicated region
    $region14: #{tpu_custom_call.1} parent=1 // pred_check
      _
    $region15: #{tpu_custom_call.1} parent=1 // pred_check_branch
      %262 = sbr.rel (0) target = $region17
    $region16: #{tpu_custom_call.1} parent=1 // pred_region
      %s264 = ssub.s32 256, 256
      %265 = vsyncadd [#allocation3], %s264
      %s266 = sshll.u32 [#allocation2], 4
      %s267 = int_to_ptr.vmem [resolvable:$true] %s266
      %272 = dma.vmem_to_hbm [thread:$0]  %s267, 256, %s3, [#allocation3], 128, 128, 8
    $region17: #{tpu_custom_call.1} parent=1 // pred_fallthru
      _
    // Predicated region
    $region18: #{tpu_custom_call.1} parent=1 // pred_check
      _
    $region19: #{tpu_custom_call.1} parent=1 // pred_check_branch
      %274 = sbr.rel (0) target = $region21
    $region20: #{tpu_custom_call.1} parent=1 // pred_region
      %275 = dma.done [#allocation3], 256
    $region21: #{tpu_custom_call.1} parent=1 // pred_fallthru
      _
    %276 = vsyncpa [#allocation3], 1

</llo_original>
